<compile_context>
chip_gen: v6e
topology: v6e:2x2x1
jax: 0.10.0
libtpu: 0.0.40
codegen_flags: <defaults>
</compile_context>

<pallas_src>
import jax
import jax.numpy as jnp
from jax.experimental import pallas as pl
from jax.experimental.pallas import tpu as pltpu


def _conv_block_kernel(cols_ref, w_ref, o_ref):
    # cols_ref : (K_pad, N*HW)        bf16 im2col (+ ones row for bias, zero pad rows)
    # w_ref    : (Cout_tile, K_pad)   bf16 flattened weight (+ bias column, zero pad)
    # o_ref    : (N, Cout_tile, HW)   f32 lane-dense output (HW in the lane dim)
    acc = jnp.dot(w_ref[...], cols_ref[...],
                  preferred_element_type=jnp.float32)   # one MXU matmul, f32 acc
    # act_fn = nn.Identity() -> no-op
    n_batch, _, hw = o_ref.shape
    for n in range(n_batch):                            # static unroll (N is tiny)
        # lane-aligned slice (offset multiple of 128) -> unmasked 256-lane stores
        o_ref[n] = acc[:, n * hw:(n + 1) * hw].astype(o_ref.dtype)


def conv_block_forward(x_nchw, weight_oihw, bias, *, stride=1, padding=1,
                       cout_tiles=1):
    """ConvBlock forward: act(conv(x)) with act = Identity, stride=1.

    x_nchw      : (N, Cin, H, W)        float32
    weight_oihw : (Cout, Cin, KH, KW)   float32 (PyTorch layout)
    bias        : (Cout,)               float32
    cout_tiles  : 1 (single step, best on 1-TC v5e/v6e) or 2 (shard Cout across
                  v7x's two TensorCores via a "parallel" grid axis).
    returns     : (N, Cout, Ho, Wo)     NCHW, Ho = H + 2p - KH + 1
    """
    assert stride == 1, "this kernel implements the default stride=1"
    N, Cin, H, W = x_nchw.shape
    Cout, Cin_w, KH, KW = weight_oihw.shape
    assert Cin == Cin_w
    assert Cout % cout_tiles == 0 and (Cout // cout_tiles) % 8 == 0

    Ho = H + 2 * padding - KH + 1
    Wo = W + 2 * padding - KW + 1
    HW = Ho * Wo
    NHW = N * HW
    K = Cin * KH * KW            # 27
    K_aug = K + 1                # +1 ones row: bias folded into the matmul
    K_pad = -(-K_aug // 16) * 16 # pad to a multiple of 16 (bf16 sublane tile) -> 32

    # ---- wrapper glue (plain JAX): zero-pad + im2col, fusible into the call ----
    x_pad = jnp.pad(x_nchw, ((0, 0), (0, 0),
                             (padding, padding), (padding, padding)))
    # Tap order (kh, kw); K-axis ordered (cin, kh, kw) to match the row-major
    # flattening of the PyTorch weight (Cout, Cin, KH, KW) -> (Cout, 27).
    taps = [x_pad[:, :, kh:kh + Ho, kw:kw + Wo]
            for kh in range(KH) for kw in range(KW)]         # each (N, Cin, Ho, Wo)
    cols = (jnp.stack(taps, axis=0)                          # (9, N, Cin, Ho, Wo)
            .transpose(2, 0, 1, 3, 4)                        # (Cin, 9, N, Ho, Wo)
            .reshape(K, NHW))                                # (27, N*HW)
    cols = jnp.concatenate(
        [cols,
         jnp.ones((1, NHW), cols.dtype),                     # bias row
         jnp.zeros((K_pad - K_aug, NHW), cols.dtype)],       # zero pad rows
        axis=0).astype(jnp.bfloat16)                         # (32, N*HW)

    w2d = weight_oihw.reshape(Cout, K)                       # free reshape (Cout, 27)
    w_aug = jnp.concatenate(
        [w2d,
         bias[:, None],                                      # bias column
         jnp.zeros((Cout, K_pad - K_aug), w2d.dtype)],       # zero pad columns
        axis=1).astype(jnp.bfloat16)                         # (Cout, 32)

    cout_tile = Cout // cout_tiles

    out = pl.pallas_call(
        _conv_block_kernel,
        out_shape=jax.ShapeDtypeStruct((N, Cout, HW), x_nchw.dtype),
        grid_spec=pltpu.PrefetchScalarGridSpec(
            num_scalar_prefetch=0,
            grid=(cout_tiles,),
            in_specs=[
                pl.BlockSpec((K_pad, NHW), lambda c: (0, 0)),       # whole im2col
                pl.BlockSpec((cout_tile, K_pad), lambda c: (c, 0)),  # Cout slice
            ],
            out_specs=pl.BlockSpec((N, cout_tile, HW), lambda c: (0, c, 0)),
        ),
        compiler_params=pltpu.CompilerParams(
            dimension_semantics=("parallel",),
            # Let XLA fuse the im2col producer into the cols input DMA
            # (avoids a separate fusion + HBM round trip of the 9x-blown-up cols).
            allow_input_fusion=[True, False],
        ),
        cost_estimate=pl.CostEstimate(
            flops=2 * Cout * K_pad * NHW,
            transcendentals=0,
            bytes_accessed=int(2 * (K_pad * NHW + Cout * K_pad)
                               + 4 * N * Cout * HW)),
    )(cols, w_aug)

    # (N, Cout, Ho*Wo) is already NCHW order: free reshape, no transpose HLO.
    return out.reshape(N, Cout, Ho, Wo)


if __name__ == "__main__":
    # ConvBlock defaults: in_channels=3, out_channels=64, k=3, s=1, p=1, Identity.
    N, Cin, H, W = 2, 3, 16, 16
    Cout, Kk = 64, 3

    key = jax.random.PRNGKey(0)
    kx, kw, kb = jax.random.split(key, 3)
    x = jax.random.normal(kx, (N, Cin, H, W), dtype=jnp.float32)
    weight = jax.random.normal(kw, (Cout, Cin, Kk, Kk), dtype=jnp.float32) * 0.1
    bias = jax.random.normal(kb, (Cout,), dtype=jnp.float32) * 0.1

    out = jax.block_until_ready(conv_block_forward(x, weight, bias))
    assert out.shape == (N, Cout, H, W)

    # Tight check: reference with operands rounded to bf16, f32 accumulation
    # (matches the kernel's MXU bf16-operand / f32-accumulate semantics).
    xr = x.astype(jnp.bfloat16).astype(jnp.float32)
    wr = weight.astype(jnp.bfloat16).astype(jnp.float32)
    br = bias.astype(jnp.bfloat16).astype(jnp.float32)
    ref_bf16 = jax.lax.conv_general_dilated(
        xr, wr, window_strides=(1, 1), padding=((1, 1), (1, 1)),
        dimension_numbers=("NCHW", "OIHW", "NCHW"),
        precision=jax.lax.Precision.HIGHEST,
    ) + br[None, :, None, None]
    assert jnp.allclose(out, ref_bf16, atol=2e-3, rtol=2e-3)

    # Loose sanity check vs the exact f32 conv (bf16 operand rounding budget).
    ref_f32 = jax.lax.conv_general_dilated(
        x, weight, window_strides=(1, 1), padding=((1, 1), (1, 1)),
        dimension_numbers=("NCHW", "OIHW", "NCHW"),
        precision=jax.lax.Precision.HIGHEST,
    ) + bias[None, :, None, None]
    assert jnp.allclose(out, ref_f32, atol=5e-2, rtol=5e-2)

    print("KERNEL_OK")
</pallas_src>

<mosaic_0001>
module attributes {stable_mosaic.version = 11 : i64} {
  func.func @_conv_block_kernel(%arg0: i32, %arg1: memref<32x512xbf16, #tpu.memory_space<vmem>>, %arg2: memref<64x32xbf16, #tpu.memory_space<vmem>>, %arg3: memref<2x64x256xf32, #tpu.memory_space<vmem>>) attributes {dimension_semantics = [#tpu.dimension_semantics<parallel>], iteration_bounds = array<i64: 1>, scalar_prefetch = 0 : i64, scratch_operands = 0 : i64, tpu.core_type = #tpu.core_type<tc>, window_params = [{pipeline_mode = #tpu.pipeline_mode<synchronous>, transform_indices = @transform_0, window_bounds = array<i64: 32, 512>}, {transform_indices = @transform_1, window_bounds = array<i64: 64, 32>}, {transform_indices = @transform_2, window_bounds = array<i64: 2, 64, 256>}]} {
    %c0 = arith.constant 0 : index
    %c0_0 = arith.constant 0 : index
    %0 = vector.load %arg2[%c0, %c0_0] : memref<64x32xbf16, #tpu.memory_space<vmem>>, vector<64x32xbf16>
    %c0_1 = arith.constant 0 : index
    %c0_2 = arith.constant 0 : index
    %1 = vector.load %arg1[%c0_1, %c0_2] : memref<32x512xbf16, #tpu.memory_space<vmem>>, vector<32x512xbf16>
    %cst = arith.constant dense<0.000000e+00> : vector<64x512xf32>
    %2 = tpu.matmul %0, %1, %cst {dimension_numbers = #tpu.dot_dimension_numbers<[1], [0], [0], [1], [0, 0, 1, 1], [], []>} : vector<64x32xbf16>, vector<32x512xbf16>, vector<64x512xf32> -> vector<64x512xf32>
    %3 = vector.extract_strided_slice %2 {offsets = [0, 0], sizes = [64, 256], strides = [1, 1]} : vector<64x512xf32> to vector<64x256xf32>
    %c0_3 = arith.constant 0 : index
    %c0_4 = arith.constant 0 : index
    %c0_5 = arith.constant 0 : index
    %4 = vector.load %arg3[%c0_3, %c0_4, %c0_5] : memref<2x64x256xf32, #tpu.memory_space<vmem>>, vector<1x64x256xf32>
    %5 = vector.shape_cast %4 : vector<1x64x256xf32> to vector<64x256xf32>
    %6 = vector.shape_cast %3 : vector<64x256xf32> to vector<1x64x256xf32>
    tpu.vector_store %arg3[%c0_3, %c0_4, %c0_5], %6 {strides = array<i32>} : memref<2x64x256xf32, #tpu.memory_space<vmem>>, vector<1x64x256xf32>,
    %7 = vector.extract_strided_slice %2 {offsets = [0, 256], sizes = [64, 256], strides = [1, 1]} : vector<64x512xf32> to vector<64x256xf32>
    %c1 = arith.constant 1 : index
    %c0_6 = arith.constant 0 : index
    %c0_7 = arith.constant 0 : index
    %8 = vector.load %arg3[%c1, %c0_6, %c0_7] : memref<2x64x256xf32, #tpu.memory_space<vmem>>, vector<1x64x256xf32>
    %9 = vector.shape_cast %8 : vector<1x64x256xf32> to vector<64x256xf32>
    %10 = vector.shape_cast %7 : vector<64x256xf32> to vector<1x64x256xf32>
    tpu.vector_store %arg3[%c1, %c0_6, %c0_7], %10 {strides = array<i32>} : memref<2x64x256xf32, #tpu.memory_space<vmem>>, vector<1x64x256xf32>,
    return
  }
  func.func @transform_0(%arg0: i32) -> (i32, i32) {
    %c0_i32 = arith.constant 0 : i32
    %c0_i32_0 = arith.constant 0 : i32
    %c0_i32_1 = arith.constant 0 : i32
    return %c0_i32, %c0_i32_0 : i32, i32
  }
  func.func @transform_1(%arg0: i32) -> (i32, i32) {
    %c0_i32 = arith.constant 0 : i32
    %c0_i32_0 = arith.constant 0 : i32
    return %arg0, %c0_i32 : i32, i32
  }
  func.func @transform_2(%arg0: i32) -> (i32, i32, i32) {
    %c0_i32 = arith.constant 0 : i32
    %c0_i32_0 = arith.constant 0 : i32
    %c0_i32_1 = arith.constant 0 : i32
    return %c0_i32, %arg0, %c0_i32_0 : i32, i32, i32
  }
}

</mosaic_0001>

<llo_original>
// kernel: tpu_custom_call.1
$region0: #{tpu_custom_call.1}
  #allocation0 [shape = 'u32[]', space=smem, size = 0x4, offset = 0x4, fixed_abs, tag = 'smem constant byte address 0x4 - core index']
  #allocation1 [shape = 'u32[144,128]{1,0:T(1,128)}', space=vmem, size = 0x12000, scoped, tag = 'internal scratch']
  %s0 = inlined_call_operand.hbm [shape: bf16[32,512], index: 0, kind: input, shape index: {}]
  %s1 = inlined_call_operand.vmem [shape: bf16[64,32], index: 1, kind: input, shape index: {}]
  %s2 = inlined_call_operand.hbm [shape: f32[2,64,256], index: 2, kind: output, shape index: {}]
  %s3 = sld [smem:[#allocation0]]
  $region22: #{tpu_custom_call.1} parent=0
    _
  %s5 = ssub.s32 1, %s3
  %s6 = scalar_select 0, %s5, %s3
  $region1: #{tpu_custom_call.1} parent=0
    #allocation2 [shape = 'u8[32768]{0}', space=vmem, size = 0x8000, scoped, tag = 'input window, operand 0, single buffered']
    #allocation3 [shape = 's32[1]{0}', space=sflag, size = 0x4, scoped, tag = 'scoped memory for tpu_custom_call.1']
    #allocation4 [shape = 's32[1]{0}', space=sflag, size = 0x4, scoped, tag = 'scoped memory for tpu_custom_call.1']
    #allocation5 [shape = 'u8[131072]{0}', space=vmem, size = 0x20000, scoped, tag = 'output window, operand 0, single buffered']
    %7 = vsyncpa [#allocation3], 0
    %8 = vsyncpa [#allocation4], 0
    // Predicated region
    $region2: #{tpu_custom_call.1} parent=1 // pred_check
      _
    $region3: #{tpu_custom_call.1} parent=1 // pred_check_branch
      %10 = sbr.rel (0) target = $region5
    $region4: #{tpu_custom_call.1} parent=1 // pred_region
      %s12 = ssub.s32 1024, 1024
      %13 = vsyncadd [#allocation3], %s12
      %s14 = sshll.u32 [#allocation2], 4
      %s15 = int_to_ptr.vmem [resolvable:$true] %s14
      %20 = dma.hbm_to_vmem [thread:$0]  %s0, 1024, %s15, [#allocation3], 256, 256, 16
    $region5: #{tpu_custom_call.1} parent=1 // pred_fallthru
      _
    // Predicated region
    $region6: #{tpu_custom_call.1} parent=1 // pred_check
      _
    $region7: #{tpu_custom_call.1} parent=1 // pred_check_branch
      %22 = sbr.rel (0) target = $region9
    $region8: #{tpu_custom_call.1} parent=1 // pred_region
      _
    $region9: #{tpu_custom_call.1} parent=1 // pred_fallthru
      _
    // Predicated region
    $region10: #{tpu_custom_call.1} parent=1 // pred_check
      _
    $region11: #{tpu_custom_call.1} parent=1 // pred_check_branch
      %24 = sbr.rel (0) target = $region13
    $region12: #{tpu_custom_call.1} parent=1 // pred_region
      %25 = dma.done [#allocation3], 1024
    $region13: #{tpu_custom_call.1} parent=1 // pred_fallthru
      _
    %v27 = vld [vmem:[%s1] sm:$0xf]
    %v28 = vld [vmem:[%s1 + $0x4] sm:$0xf]
    %v29 = vld [vmem:[%s1 + $0x8] sm:$0xf]
    %v30 = vld [vmem:[%s1 + $0xc] sm:$0xf]
    %v31 = vld [vmem:[%s1 + $0x10] sm:$0xf]
    %v32 = vld [vmem:[%s1 + $0x14] sm:$0xf]
    %v33 = vld [vmem:[%s1 + $0x18] sm:$0xf]
    %v34 = vld [vmem:[%s1 + $0x1c] sm:$0xf]
    %v35 = vld [vmem:[#allocation2] sm:$0xff]
    %v36 = vld [vmem:[#allocation2 + $0x8] sm:$0xff]
    %v37 = vld [vmem:[#allocation2 + $0x10] sm:$0xff]
    %v38 = vld [vmem:[#allocation2 + $0x18] sm:$0xff]
    %v39 = vld [vmem:[#allocation2 + $0x20] sm:$0xff]
    %v40 = vld [vmem:[#allocation2 + $0x28] sm:$0xff]
    %v41 = vld [vmem:[#allocation2 + $0x30] sm:$0xff]
    %v42 = vld [vmem:[#allocation2 + $0x38] sm:$0xff]
    %v51 = vunpack.c.l.b16 %v27
    %v52 = vunpack.c.l.b16 %v28
    %v53 = vunpack.c.l.b16 %v29
    %v54 = vunpack.c.l.b16 %v30
    %v55 = vunpack.c.l.b16 %v31
    %v56 = vunpack.c.l.b16 %v32
    %v57 = vunpack.c.l.b16 %v33
    %v58 = vunpack.c.l.b16 %v34
    %v59 = vpack.c.b16 %v52, %v51
    %v60 = vpack.c.b16 %v54, %v53
    %v61 = vpack.c.b16 %v56, %v55
    %v62 = vpack.c.b16 %v58, %v57
    %v71 = vunpack.c.l.b16 %v35
    %v72 = vunpack.c.h.b16 %v35
    %v73 = vunpack.c.l.b16 %v36
    %v74 = vunpack.c.h.b16 %v36
    %v75 = vunpack.c.l.b16 %v37
    %v76 = vunpack.c.h.b16 %v37
    %v77 = vunpack.c.l.b16 %v38
    %v78 = vunpack.c.h.b16 %v38
    %v79 = vunpack.c.l.b16 %v39
    %v80 = vunpack.c.h.b16 %v39
    %v81 = vunpack.c.l.b16 %v40
    %v82 = vunpack.c.h.b16 %v40
    %v83 = vunpack.c.l.b16 %v41
    %v84 = vunpack.c.h.b16 %v41
    %v85 = vunpack.c.l.b16 %v42
    %v86 = vunpack.c.h.b16 %v42
    %v87 = vpack.c.b16 %v75, %v71
    %v88 = vpack.c.b16 %v76, %v72
    %v89 = vpack.c.b16 %v77, %v73
    %v90 = vpack.c.b16 %v78, %v74
    %v91 = vpack.c.b16 %v83, %v79
    %v92 = vpack.c.b16 %v84, %v80
    %v93 = vpack.c.b16 %v85, %v81
    %v94 = vpack.c.b16 %v86, %v82
    %vm103 = vcmask 261120
    %v105 = vsel %vm103, %v59, 0
    %v108 = vsel %vm103, %v60, 0
    %v111 = vsel %vm103, %v61, 0
    %v114 = vsel %vm103, %v62, 0
    %116 = vmatprep.subr.bf16.mxu0 0
    %117 = vmatpush1.bf16.msra.mxu0 0
    %118 = vmatprep.subr.bf16.mxu0 0
    %119 = vmatpush1.bf16.msra.mxu0 0
    %120 = vmatprep.subr.bf16.mxu0 0
    %121 = vmatpush1.bf16.msra.mxu0 0
    %122 = vmatprep.subr.bf16.mxu0 0
    %123 = vmatpush1.bf16.msra.mxu0 0
    %124 = vmatprep.subr.bf16.mxu0 0
    %125 = vmatpush1.bf16.msra.mxu0 0
    %126 = vmatprep.subr.bf16.mxu0 0
    %127 = vmatpush1.bf16.msra.mxu0 0
    %128 = vmatprep.subr.bf16.mxu0 %v92
    %129 = vmatpush1.bf16.msra.mxu0 %v91
    %130 = vmatprep.subr.bf16.mxu0 %v88
    %131 = vmatpush1.bf16.msra.mxu0 %v87
    %132 = vmatprep.subr.bf16.mxu0 0
    %133 = vmatpush2.bf16.msra.mxu0 0
    %134 = vmatprep.subr.bf16.mxu0 0
    %135 = vmatpush2.bf16.msra.mxu0 0
    %136 = vmatprep.subr.bf16.mxu0 0
    %137 = vmatpush2.bf16.msra.mxu0 0
    %138 = vmatprep.subr.bf16.mxu0 0
    %139 = vmatpush2.bf16.msra.mxu0 0
    %140 = vmatprep.subr.bf16.mxu0 0
    %141 = vmatpush2.bf16.msra.mxu0 0
    %142 = vmatprep.subr.bf16.mxu0 0
    %143 = vmatpush2.bf16.msra.mxu0 0
    %144 = vmatprep.subr.bf16.mxu0 0
    %145 = vmatpush2.bf16.msra.mxu0 0
    %146 = vmatprep.subr.bf16.mxu0 0
    %147 = vmatpush2.bf16.msra.mxu0 0
    %148 = vmatprep.mubr.bf16.mxu0 0
    %149 = vmatmul.mubr.bf16.gmra.mxu0 %v105
    %v150 = vpop.f32.mrf.mxu0
    %v151 = vadd.f32 0.0, %v150
    %v152 = vpop.f32.mrf.mxu0
    %v153 = vadd.f32 0.0, %v152
    %v154 = vpop.f32.mrf.mxu0
    %v155 = vadd.f32 0.0, %v154
    %v156 = vpop.f32.mrf.mxu0
    %v157 = vadd.f32 0.0, %v156
    %158 = vmatprep.mubr.bf16.mxu0 0
    %159 = vmatmul.mubr.bf16.gmra.mxu0 %v108
    %v160 = vpop.f32.mrf.mxu0
    %v161 = vadd.f32 0.0, %v160
    %v162 = vpop.f32.mrf.mxu0
    %v163 = vadd.f32 0.0, %v162
    %v164 = vpop.f32.mrf.mxu0
    %v165 = vadd.f32 0.0, %v164
    %v166 = vpop.f32.mrf.mxu0
    %v167 = vadd.f32 0.0, %v166
    %168 = vmatprep.mubr.bf16.mxu0 0
    %169 = vmatmul.mubr.bf16.gmra.mxu0 %v111
    %v170 = vpop.f32.mrf.mxu0
    %v171 = vadd.f32 0.0, %v170
    %v172 = vpop.f32.mrf.mxu0
    %v173 = vadd.f32 0.0, %v172
    %v174 = vpop.f32.mrf.mxu0
    %v175 = vadd.f32 0.0, %v174
    %v176 = vpop.f32.mrf.mxu0
    %v177 = vadd.f32 0.0, %v176
    %178 = vmatprep.mubr.bf16.mxu0 0
    %179 = vmatmul.mubr.bf16.gmra.mxu0 %v114
    %v180 = vpop.f32.mrf.mxu0
    %v181 = vadd.f32 0.0, %v180
    %v182 = vpop.f32.mrf.mxu0
    %v183 = vadd.f32 0.0, %v182
    %v184 = vpop.f32.mrf.mxu0
    %v185 = vadd.f32 0.0, %v184
    %v186 = vpop.f32.mrf.mxu0
    %v187 = vadd.f32 0.0, %v186
    %188 = vdwg.mxu0
    %189 = vmatprep.subr.bf16.mxu0 0
    %190 = vmatpush1.bf16.msra.mxu0 0
    %191 = vmatprep.subr.bf16.mxu0 0
    %192 = vmatpush1.bf16.msra.mxu0 0
    %193 = vmatprep.subr.bf16.mxu0 0
    %194 = vmatpush1.bf16.msra.mxu0 0
    %195 = vmatprep.subr.bf16.mxu0 0
    %196 = vmatpush1.bf16.msra.mxu0 0
    %197 = vmatprep.subr.bf16.mxu0 0
    %198 = vmatpush1.bf16.msra.mxu0 0
    %199 = vmatprep.subr.bf16.mxu0 0
    %200 = vmatpush1.bf16.msra.mxu0 0
    %201 = vmatprep.subr.bf16.mxu0 %v94
    %202 = vmatpush1.bf16.msra.mxu0 %v93
    %203 = vmatprep.subr.bf16.mxu0 %v90
    %204 = vmatpush1.bf16.msra.mxu0 %v89
    %205 = vmatprep.subr.bf16.mxu0 0
    %206 = vmatpush2.bf16.msra.mxu0 0
    %207 = vmatprep.subr.bf16.mxu0 0
    %208 = vmatpush2.bf16.msra.mxu0 0
    %209 = vmatprep.subr.bf16.mxu0 0
    %210 = vmatpush2.bf16.msra.mxu0 0
    %211 = vmatprep.subr.bf16.mxu0 0
    %212 = vmatpush2.bf16.msra.mxu0 0
    %213 = vmatprep.subr.bf16.mxu0 0
    %214 = vmatpush2.bf16.msra.mxu0 0
    %215 = vmatprep.subr.bf16.mxu0 0
    %216 = vmatpush2.bf16.msra.mxu0 0
    %217 = vmatprep.subr.bf16.mxu0 0
    %218 = vmatpush2.bf16.msra.mxu0 0
    %219 = vmatprep.subr.bf16.mxu0 0
    %220 = vmatpush2.bf16.msra.mxu0 0
    %221 = vmatprep.mubr.bf16.mxu0 0
    %222 = vmatmul.mubr.bf16.gmra.mxu0 %v105
    %v223 = vpop.f32.mrf.mxu0
    %v224 = vadd.f32 0.0, %v223
    %v225 = vpop.f32.mrf.mxu0
    %v226 = vadd.f32 0.0, %v225
    %v227 = vpop.f32.mrf.mxu0
    %v228 = vadd.f32 0.0, %v227
    %v229 = vpop.f32.mrf.mxu0
    %v230 = vadd.f32 0.0, %v229
    %231 = vmatprep.mubr.bf16.mxu0 0
    %232 = vmatmul.mubr.bf16.gmra.mxu0 %v108
    %v233 = vpop.f32.mrf.mxu0
    %v234 = vadd.f32 0.0, %v233
    %v235 = vpop.f32.mrf.mxu0
    %v236 = vadd.f32 0.0, %v235
    %v237 = vpop.f32.mrf.mxu0
    %v238 = vadd.f32 0.0, %v237
    %v239 = vpop.f32.mrf.mxu0
    %v240 = vadd.f32 0.0, %v239
    %241 = vmatprep.mubr.bf16.mxu0 0
    %242 = vmatmul.mubr.bf16.gmra.mxu0 %v111
    %v243 = vpop.f32.mrf.mxu0
    %v244 = vadd.f32 0.0, %v243
    %v245 = vpop.f32.mrf.mxu0
    %v246 = vadd.f32 0.0, %v245
    %v247 = vpop.f32.mrf.mxu0
    %v248 = vadd.f32 0.0, %v247
    %v249 = vpop.f32.mrf.mxu0
    %v250 = vadd.f32 0.0, %v249
    %251 = vmatprep.mubr.bf16.mxu0 0
    %252 = vmatmul.mubr.bf16.gmra.mxu0 %v114
    %v253 = vpop.f32.mrf.mxu0
    %v254 = vadd.f32 0.0, %v253
    %v255 = vpop.f32.mrf.mxu0
    %v256 = vadd.f32 0.0, %v255
    %v257 = vpop.f32.mrf.mxu0
    %v258 = vadd.f32 0.0, %v257
    %v259 = vpop.f32.mrf.mxu0
    %v260 = vadd.f32 0.0, %v259
    %261 = vdwg.mxu0
    %262 = vst [vmem:[#allocation5] sm:$0xff] %v151
    %263 = vst [vmem:[#allocation5 + $0x8] sm:$0xff] %v153
    %264 = vst [vmem:[#allocation5 + $0x10] sm:$0xff] %v155
    %265 = vst [vmem:[#allocation5 + $0x18] sm:$0xff] %v157
    %266 = vst [vmem:[#allocation5 + $0x20] sm:$0xff] %v161
    %267 = vst [vmem:[#allocation5 + $0x28] sm:$0xff] %v163
    %268 = vst [vmem:[#allocation5 + $0x30] sm:$0xff] %v165
    %269 = vst [vmem:[#allocation5 + $0x38] sm:$0xff] %v167
    %270 = vst [vmem:[#allocation5 + $0x40] sm:$0xff] %v171
    %271 = vst [vmem:[#allocation5 + $0x48] sm:$0xff] %v173
    %272 = vst [vmem:[#allocation5 + $0x50] sm:$0xff] %v175
    %273 = vst [vmem:[#allocation5 + $0x58] sm:$0xff] %v177
    %274 = vst [vmem:[#allocation5 + $0x60] sm:$0xff] %v181
    %275 = vst [vmem:[#allocation5 + $0x68] sm:$0xff] %v183
    %276 = vst [vmem:[#allocation5 + $0x70] sm:$0xff] %v185
    %277 = vst [vmem:[#allocation5 + $0x78] sm:$0xff] %v187
    %s278 = scalar_lea.vmem [#allocation5], 128
    %279 = vst [vmem:[%s278] sm:$0xff] %v224
    %280 = vst [vmem:[%s278 + $0x8] sm:$0xff] %v226
    %281 = vst [vmem:[%s278 + $0x10] sm:$0xff] %v228
    %282 = vst [vmem:[%s278 + $0x18] sm:$0xff] %v230
    %283 = vst [vmem:[%s278 + $0x20] sm:$0xff] %v234
    %284 = vst [vmem:[%s278 + $0x28] sm:$0xff] %v236
    %285 = vst [vmem:[%s278 + $0x30] sm:$0xff] %v238
    %286 = vst [vmem:[%s278 + $0x38] sm:$0xff] %v240
    %287 = vst [vmem:[%s278 + $0x40] sm:$0xff] %v244
    %288 = vst [vmem:[%s278 + $0x48] sm:$0xff] %v246
    %289 = vst [vmem:[%s278 + $0x50] sm:$0xff] %v248
    %290 = vst [vmem:[%s278 + $0x58] sm:$0xff] %v250
    %291 = vst [vmem:[%s278 + $0x60] sm:$0xff] %v254
    %292 = vst [vmem:[%s278 + $0x68] sm:$0xff] %v256
    %293 = vst [vmem:[%s278 + $0x70] sm:$0xff] %v258
    %294 = vst [vmem:[%s278 + $0x78] sm:$0xff] %v260
    // Predicated region
    $region14: #{tpu_custom_call.1} parent=1 // pred_check
      _
    $region15: #{tpu_custom_call.1} parent=1 // pred_check_branch
      %296 = sbr.rel (0) target = $region17
    $region16: #{tpu_custom_call.1} parent=1 // pred_region
      %s298 = ssub.s32 4096, 4096
      %299 = vsyncadd [#allocation4], %s298
      %s300 = sshll.u32 [#allocation5], 4
      %s301 = int_to_ptr.vmem [resolvable:$true] %s300
      %306 = dma.vmem_to_hbm [thread:$0]  %s301, 4096, %s2, [#allocation4], 256, 256, 16
    $region17: #{tpu_custom_call.1} parent=1 // pred_fallthru
      _
    // Predicated region
    $region18: #{tpu_custom_call.1} parent=1 // pred_check
      _
    $region19: #{tpu_custom_call.1} parent=1 // pred_check_branch
      %308 = sbr.rel (0) target = $region21
    $region20: #{tpu_custom_call.1} parent=1 // pred_region
      %309 = dma.done [#allocation4], 4096
    $region21: #{tpu_custom_call.1} parent=1 // pred_fallthru
      _
    %310 = vsyncpa [#allocation3], 1
    %311 = vsyncpa [#allocation4], 1

</llo_original>
